<compile_context>
chip_gen: v6e
topology: v6e:2x2x1
jax: 0.10.0
libtpu: 0.0.40
codegen_flags: <defaults>
</compile_context>

<pallas_src>
import functools
import math

import jax
import jax.numpy as jnp
from jax import lax
from jax.experimental import pallas as pl
from jax.experimental.pallas import tpu as pltpu

# Set to jnp.bfloat16 on v6e / v7x to feed the MXU in bf16 (fp32 accumulation
# and softmax statistics stay fp32, per-chip advice).  Kept None here so the
# fp32 demo matches the reference tightly on any chip (incl. v5e).
MXU_DTYPE = None

_MASK_VALUE = -1e30                 # finite "minus inf" -> NaN-safe causal mask
_VMEM_LIMIT = 32 * 1024 * 1024      # fits default scoped VMEM on v5e/v6e/v7x


def _pick_tile(dim, candidates):
    """Largest candidate tile that divides `dim`, else the full dim."""
    for c in candidates:
        if dim >= c and dim % c == 0:
            return c
    return dim


# ---------------------------------------------------------------------------
# Tiled projection:  out[s] = x @ w[s].T   (torch nn.Linear (out, in) layout)
# ---------------------------------------------------------------------------
def _linear_kernel(x_ref, w_ref, o_ref, acc_ref, *, mxu_dtype):
    k = pl.program_id(3)

    @pl.when(k == 0)
    def _init():
        acc_ref[...] = jnp.zeros(acc_ref.shape, acc_ref.dtype)

    x = x_ref[...]
    w = w_ref[0]
    if mxu_dtype is not None:
        x = x.astype(mxu_dtype)
        w = w.astype(mxu_dtype)
    # Contract x's K dim against w's second dim == x @ w.T; no transposed
    # weight copy is ever materialized in HBM.
    acc_ref[...] += lax.dot_general(
        x, w, (((1,), (1,)), ((), ())), preferred_element_type=jnp.float32)

    @pl.when(k == pl.num_programs(3) - 1)
    def _store():
        o_ref[0] = acc_ref[...].astype(o_ref.dtype)


def _linear(x, w):
    """x: (M, K); w: (S, N, K) stacked torch Linear weights.  Returns (S, M, N)."""
    M, K = x.shape
    S, N, K2 = w.shape
    assert K == K2
    tm = _pick_tile(M, (512, 256, 128))
    tn = _pick_tile(N, (512, 256, 128))
    tk = _pick_tile(K, (256, 128))   # keep double-buffered fp32 tiles well under v7x 64 MiB
    grid = (S, M // tm, N // tn, K // tk)
    kernel = functools.partial(_linear_kernel, mxu_dtype=MXU_DTYPE)
    return pl.pallas_call(
        kernel,
        out_shape=jax.ShapeDtypeStruct((S, M, N), x.dtype),
        grid_spec=pltpu.PrefetchScalarGridSpec(
            num_scalar_prefetch=0,
            grid=grid,
            in_specs=[
                pl.BlockSpec((tm, tk), lambda s, i, j, k: (i, k)),
                pl.BlockSpec((1, tn, tk), lambda s, i, j, k: (s, j, k)),
            ],
            out_specs=pl.BlockSpec((1, tm, tn), lambda s, i, j, k: (s, i, j)),
            scratch_shapes=[pltpu.VMEM((tm, tn), jnp.float32)],
        ),
        compiler_params=pltpu.CompilerParams(
            dimension_semantics=("parallel", "parallel", "parallel", "arbitrary"),
            vmem_limit_bytes=_VMEM_LIMIT,
        ),
    )(x, w)


# ---------------------------------------------------------------------------
# Flash attention with fused (concat-free) RoPE, all heads per grid step,
# causal block skipping, and lane-dense (B, T, C) output.
# ---------------------------------------------------------------------------
def _flash_attn_kernel(q_ref, k_ref, v_ref, cos_q_ref, sin_q_ref,
                       cos_k_ref, sin_k_ref, o_ref,
                       m_scr, l_scr, acc_scr, *, n_head, scale, mxu_dtype):
    qi = pl.program_id(1)
    ki = pl.program_id(2)
    tq = q_ref.shape[2]
    tk = k_ref.shape[2]
    C = q_ref.shape[3]
    hd = C // n_head
    d = hd // 2

    @pl.when(ki == 0)
    def _init():
        m_scr[...] = jnp.full(m_scr.shape, -jnp.inf, m_scr.dtype)
        l_scr[...] = jnp.zeros(l_scr.shape, l_scr.dtype)
        acc_scr[...] = jnp.zeros(acc_scr.shape, acc_scr.dtype)

    # Skip kv blocks that lie entirely above the causal diagonal.
    @pl.when(ki * tk <= qi * tq + tq - 1)
    def _compute():
        # Lane-dense (tq, C) / (tk, C) tiles with all heads folded into lanes.
        q = q_ref[0, 0].astype(jnp.float32) * scale   # fold 1/sqrt(hd) into q
        k = k_ref[0, 0].astype(jnp.float32)
        v = v_ref[0, 0].astype(jnp.float32)
        cq = cos_q_ref[...]
        sq = sin_q_ref[...]
        ck = cos_k_ref[...]
        sk = sin_k_ref[...]

        rows = qi * tq + lax.broadcasted_iota(jnp.int32, (tq, tk), 0)
        cols = ki * tk + lax.broadcasted_iota(jnp.int32, (tq, tk), 1)
        causal = cols <= rows

        def rope_halves(xh, c, s):
            x1 = xh[:, :d]
            x2 = xh[:, d:]
            return x1 * c + x2 * s, x2 * c - x1 * s

        def mxu(a):
            return a if mxu_dtype is None else a.astype(mxu_dtype)

        for h in range(n_head):
            qh = q[:, h * hd:(h + 1) * hd]
            kh = k[:, h * hd:(h + 1) * hd]
            vh = v[:, h * hd:(h + 1) * hd]

            qa, qb = rope_halves(qh, cq, sq)
            ka, kb = rope_halves(kh, ck, sk)

            # rot(q) . rot(k)^T via the two rotated halves (no concatenate).
            s = jnp.dot(mxu(qa), mxu(ka).T, preferred_element_type=jnp.float32)
            s += jnp.dot(mxu(qb), mxu(kb).T, preferred_element_type=jnp.float32)
            s = jnp.where(causal, s, _MASK_VALUE)

            m_prev = m_scr[h]                                    # (tq, 1)
            m_new = jnp.maximum(m_prev, jnp.max(s, axis=-1, keepdims=True))
            alpha = jnp.exp(m_prev - m_new)
            p = jnp.exp(s - m_new)                               # (tq, tk)
            l_scr[h] = alpha * l_scr[h] + jnp.sum(p, axis=-1, keepdims=True)
            acc_scr[h] = alpha * acc_scr[h] + jnp.dot(
                mxu(p), mxu(vh), preferred_element_type=jnp.float32)
            m_scr[h] = m_new

    @pl.when(ki == pl.num_programs(2) - 1)
    def _finalize():
        for h in range(n_head):
            inv_l = pl.reciprocal(l_scr[h], approx=True)         # EUP, not VALU
            o_ref[0, :, h * hd:(h + 1) * hd] = (
                acc_scr[h] * inv_l).astype(o_ref.dtype)


# ---------------------------------------------------------------------------
# Module forward
# ---------------------------------------------------------------------------
def causal_self_attention(x, w_attn, w_proj, n_head):
    """x: (B, T, C); w_attn: (3C, C); w_proj: (C, C) (torch Linear (out,in))."""
    B, T, C = x.shape
    assert C % n_head == 0
    hd = C // n_head
    d = hd // 2

    # Fused qkv projection -> (3, B*T, C): q/k/v become separate lane-dense
    # slabs selectable purely by a BlockSpec index (no wrapper split/transpose).
    # w_attn.reshape is a pure row split of the (3C, C) weight (no transpose).
    qkv = _linear(x.reshape(B * T, C), w_attn.reshape(3, C, C))
    qkv = qkv.reshape(3, B, T, C)          # pure split of axis 1, no permute

    # Rotary tables (Rotary(dim=head_dim, base=10000)); shared by all heads.
    inv_freq = 1.0 / (10000.0 ** (jnp.arange(0, hd, 2, dtype=jnp.float32) / hd))
    t = jnp.arange(T, dtype=jnp.float32)
    freqs = jnp.outer(t, inv_freq)         # (T, hd//2)
    cos = jnp.cos(freqs)
    sin = jnp.sin(freqs)

    tq = _pick_tile(T, (256, 128))
    tk = _pick_tile(T, (256, 128))
    grid = (B, T // tq, T // tk)           # kv (reduction) axis last

    kernel = functools.partial(
        _flash_attn_kernel, n_head=n_head, scale=1.0 / math.sqrt(hd),
        mxu_dtype=MXU_DTYPE)

    y = pl.pallas_call(
        kernel,
        out_shape=jax.ShapeDtypeStruct((B, T, C), x.dtype),
        grid_spec=pltpu.PrefetchScalarGridSpec(
            num_scalar_prefetch=0,
            grid=grid,
            in_specs=[
                pl.BlockSpec((1, 1, tq, C), lambda b, qi, ki: (0, b, qi, 0)),  # q
                pl.BlockSpec((1, 1, tk, C), lambda b, qi, ki: (1, b, ki, 0)),  # k
                pl.BlockSpec((1, 1, tk, C), lambda b, qi, ki: (2, b, ki, 0)),  # v
                pl.BlockSpec((tq, d), lambda b, qi, ki: (qi, 0)),              # cos @ q rows
                pl.BlockSpec((tq, d), lambda b, qi, ki: (qi, 0)),              # sin @ q rows
                pl.BlockSpec((tk, d), lambda b, qi, ki: (ki, 0)),              # cos @ k rows
                pl.BlockSpec((tk, d), lambda b, qi, ki: (ki, 0)),              # sin @ k rows
            ],
            out_specs=pl.BlockSpec((1, tq, C), lambda b, qi, ki: (b, qi, 0)),
            scratch_shapes=[
                pltpu.VMEM((n_head, tq, 1), jnp.float32),    # running max m
                pltpu.VMEM((n_head, tq, 1), jnp.float32),    # running sum l
                pltpu.VMEM((n_head, tq, hd), jnp.float32),   # output accumulator
            ],
        ),
        compiler_params=pltpu.CompilerParams(
            dimension_semantics=("parallel", "parallel", "arbitrary"),
            vmem_limit_bytes=_VMEM_LIMIT,
        ),
        cost_estimate=pl.CostEstimate(
            flops=4 * B * n_head * T * T * hd,
            transcendentals=B * n_head * T * T,
            bytes_accessed=4 * (3 * B * T * C + B * T * C + 2 * T * d)),
    )(qkv, qkv, qkv, cos, sin, cos, sin)

    # Output projection y @ w_proj.T (weight contracted untransposed in-kernel).
    y = _linear(y.reshape(B * T, C), w_proj.reshape(1, C, C))
    return y.reshape(B, T, C)


# ---------------------------------------------------------------------------
# Pure-JAX reference (for sanity checking)
# ---------------------------------------------------------------------------
def _reference(x, w_attn, w_proj, n_head):
    B, T, C = x.shape
    hd = C // n_head
    qkv = x @ w_attn.T
    q, k, v = jnp.split(qkv, 3, axis=2)
    q = q.reshape(B, T, n_head, hd)
    k = k.reshape(B, T, n_head, hd)
    v = v.reshape(B, T, n_head, hd)

    inv_freq = 1.0 / (10000.0 ** (jnp.arange(0, hd, 2, dtype=jnp.float32) / hd))
    t = jnp.arange(T, dtype=jnp.float32)
    freqs = jnp.outer(t, inv_freq)
    cos = jnp.cos(freqs)[None, :, None, :]
    sin = jnp.sin(freqs)[None, :, None, :]

    def rope(x):
        d = x.shape[-1] // 2
        x1, x2 = x[..., :d], x[..., d:]
        return jnp.concatenate([x1 * cos + x2 * sin, -x1 * sin + x2 * cos], axis=-1)

    q = rope(q).transpose(0, 2, 1, 3)
    k = rope(k).transpose(0, 2, 1, 3)
    v = v.transpose(0, 2, 1, 3)

    s = jnp.einsum("bhqd,bhkd->bhqk", q, k) / math.sqrt(hd)
    mask = jnp.tril(jnp.ones((T, T), dtype=bool))
    s = jnp.where(mask[None, None], s, -jnp.inf)
    p = jax.nn.softmax(s, axis=-1)
    y = jnp.einsum("bhqk,bhkd->bhqd", p, v)
    y = y.transpose(0, 2, 1, 3).reshape(B, T, C)
    return y @ w_proj.T


if __name__ == "__main__":
    B, T, C, H = 2, 8, 32, 4   # batch, seq, n_embd, n_head -> head_dim = 8
    key = jax.random.PRNGKey(0)
    kx, kw1, kw2 = jax.random.split(key, 3)

    x = jax.random.normal(kx, (B, T, C), jnp.float32)
    bound = 1.0 / math.sqrt(C)  # nn.Linear default init bound
    w_attn = jax.random.uniform(kw1, (3 * C, C), jnp.float32, -bound, bound)
    w_proj = jax.random.uniform(kw2, (C, C), jnp.float32, -bound, bound)

    y = causal_self_attention(x, w_attn, w_proj, H)
    jax.block_until_ready(y)

    y_ref = _reference(x, w_attn, w_proj, H)
    assert y.shape == (B, T, C)
    assert jnp.allclose(y, y_ref, atol=5e-3, rtol=5e-3), "mismatch vs reference"

    print("KERNEL_OK")
</pallas_src>

<mosaic_0001>
module attributes {stable_mosaic.version = 11 : i64} {
  func.func @_linear_kernel(%arg0: i32, %arg1: i32, %arg2: i32, %arg3: i32, %arg4: memref<16x32xf32, #tpu.memory_space<vmem>>, %arg5: memref<1x32x32xf32, #tpu.memory_space<vmem>>, %arg6: memref<1x16x32xf32, #tpu.memory_space<vmem>>, %arg7: memref<16x32xf32, #tpu.memory_space<vmem>>) attributes {dimension_semantics = [#tpu.dimension_semantics<parallel>, #tpu.dimension_semantics<parallel>, #tpu.dimension_semantics<parallel>, #tpu.dimension_semantics<arbitrary>], iteration_bounds = array<i64: 3, 1, 1, 1>, scalar_prefetch = 0 : i64, scratch_operands = 1 : i64, tpu.core_type = #tpu.core_type<tc>, window_params = [{transform_indices = @transform_0, window_bounds = array<i64: 16, 32>}, {transform_indices = @transform_1, window_bounds = array<i64: 1, 32, 32>}, {transform_indices = @transform_2, window_bounds = array<i64: 1, 16, 32>}]} {
    %c0_i32 = arith.constant 0 : i32
    %0 = arith.cmpi eq, %arg3, %c0_i32 : i32
    %1 = arith.extui %0 : i1 to i32
    %c0_i32_0 = arith.constant 0 : i32
    %2 = arith.cmpi ne, %1, %c0_i32_0 : i32
    scf.if %2 {
      %cst_11 = arith.constant 0.000000e+00 : f32
      %13 = vector.broadcast %cst_11 : f32 to vector<16x32xf32>
      %c0_12 = arith.constant 0 : index
      %c0_13 = arith.constant 0 : index
      %14 = vector.load %arg7[%c0_12, %c0_13] : memref<16x32xf32, #tpu.memory_space<vmem>>, vector<16x32xf32>
      tpu.vector_store %arg7[%c0_12, %c0_13], %13 {strides = array<i32>} : memref<16x32xf32, #tpu.memory_space<vmem>>, vector<16x32xf32>,
    } else {
    }
    %c0 = arith.constant 0 : index
    %c0_1 = arith.constant 0 : index
    %3 = vector.load %arg4[%c0, %c0_1] : memref<16x32xf32, #tpu.memory_space<vmem>>, vector<16x32xf32>
    %c0_2 = arith.constant 0 : index
    %c0_3 = arith.constant 0 : index
    %c0_4 = arith.constant 0 : index
    %4 = vector.load %arg5[%c0_2, %c0_3, %c0_4] : memref<1x32x32xf32, #tpu.memory_space<vmem>>, vector<1x32x32xf32>
    %5 = vector.shape_cast %4 : vector<1x32x32xf32> to vector<32x32xf32>
    %c0_5 = arith.constant 0 : index
    %c0_6 = arith.constant 0 : index
    %6 = vector.load %arg7[%c0_5, %c0_6] : memref<16x32xf32, #tpu.memory_space<vmem>>, vector<16x32xf32>
    %cst = arith.constant dense<0.000000e+00> : vector<16x32xf32>
    %7 = tpu.matmul %3, %5, %cst {dimension_numbers = #tpu.dot_dimension_numbers<[1], [1], [0], [0], [0, 0, 1, 0], [], []>} : vector<16x32xf32>, vector<32x32xf32>, vector<16x32xf32> -> vector<16x32xf32>
    %8 = arith.addf %6, %7 : vector<16x32xf32>
    %c0_7 = arith.constant 0 : index
    %c0_8 = arith.constant 0 : index
    %9 = vector.load %arg7[%c0_7, %c0_8] : memref<16x32xf32, #tpu.memory_space<vmem>>, vector<16x32xf32>
    tpu.vector_store %arg7[%c0_7, %c0_8], %8 {strides = array<i32>} : memref<16x32xf32, #tpu.memory_space<vmem>>, vector<16x32xf32>,
    %c0_i32_9 = arith.constant 0 : i32
    %10 = arith.cmpi eq, %arg3, %c0_i32_9 : i32
    %11 = arith.extui %10 : i1 to i32
    %c0_i32_10 = arith.constant 0 : i32
    %12 = arith.cmpi ne, %11, %c0_i32_10 : i32
    scf.if %12 {
      %c0_11 = arith.constant 0 : index
      %c0_12 = arith.constant 0 : index
      %13 = vector.load %arg7[%c0_11, %c0_12] : memref<16x32xf32, #tpu.memory_space<vmem>>, vector<16x32xf32>
      %c0_13 = arith.constant 0 : index
      %c0_14 = arith.constant 0 : index
      %c0_15 = arith.constant 0 : index
      %14 = vector.load %arg6[%c0_13, %c0_14, %c0_15] : memref<1x16x32xf32, #tpu.memory_space<vmem>>, vector<1x16x32xf32>
      %15 = vector.shape_cast %14 : vector<1x16x32xf32> to vector<16x32xf32>
      %16 = vector.shape_cast %13 : vector<16x32xf32> to vector<1x16x32xf32>
      tpu.vector_store %arg6[%c0_13, %c0_14, %c0_15], %16 {strides = array<i32>} : memref<1x16x32xf32, #tpu.memory_space<vmem>>, vector<1x16x32xf32>,
    } else {
    }
    return
  }
  func.func @transform_0(%arg0: i32, %arg1: i32, %arg2: i32, %arg3: i32) -> (i32, i32) {
    %c0_i32 = arith.constant 0 : i32
    return %arg1, %arg3 : i32, i32
  }
  func.func @transform_1(%arg0: i32, %arg1: i32, %arg2: i32, %arg3: i32) -> (i32, i32, i32) {
    %c0_i32 = arith.constant 0 : i32
    return %arg0, %arg2, %arg3 : i32, i32, i32
  }
  func.func @transform_2(%arg0: i32, %arg1: i32, %arg2: i32, %arg3: i32) -> (i32, i32, i32) {
    %c0_i32 = arith.constant 0 : i32
    return %arg0, %arg1, %arg2 : i32, i32, i32
  }
}

</mosaic_0001>

<llo_original>
// kernel: tpu_custom_call.1
$region0: #{tpu_custom_call.1}
  #allocation0 [shape = 'u32[]', space=smem, size = 0x4, offset = 0x4, fixed_abs, tag = 'smem constant byte address 0x4 - core index']
  #allocation1 [shape = 'u32[144,128]{1,0:T(1,128)}', space=vmem, size = 0x12000, scoped, tag = 'internal scratch']
  #allocation2 [shape = 'f32[16,32]{1,0:T(8,128)}', space=vmem, size = 0x2000, scoped, tag = 'scratch operand']
  %s0 = inlined_call_operand.hbm [shape: f32[16,32], index: 0, kind: input, shape index: {}]
  %s1 = inlined_call_operand.hbm [shape: f32[3,32,32], index: 1, kind: input, shape index: {}]
  %s2 = inlined_call_operand.hbm [shape: f32[3,16,32], index: 2, kind: output, shape index: {}]
  %s3 = sld [smem:[#allocation0]]
  $region57: #{tpu_custom_call.1} parent=0
    _
  %s5 = ssub.s32 1, %s3
  %s6 = scalar_select 0, %s5, %s3
  $region1: #{tpu_custom_call.1} parent=0
    #allocation3 [shape = 'u8[8192]{0}', space=vmem, size = 0x2000, scoped, tag = 'input window, operand 0, single buffered']
    #allocation4 [shape = 's32[2]{0}', space=sflag, size = 0x8, scoped, tag = 'scoped memory for tpu_custom_call.1']
    #allocation5 [shape = 's32[2]{0}', space=sflag, size = 0x8, scoped, tag = 'scoped memory for tpu_custom_call.1']
    #allocation6 [shape = 'u8[32768]{0}', space=vmem, size = 0x8000, scoped, tag = 'input window, operand 1']
    #allocation7 [shape = 's32[2]{0}', space=sflag, size = 0x8, scoped, tag = 'scoped memory for tpu_custom_call.1']
    #allocation8 [shape = 'u8[16384]{0}', space=vmem, size = 0x4000, scoped, tag = 'output window, operand 0']
    %7 = vsyncpa [#allocation4], 0
    %8 = vsyncpa [#allocation7], 0
    %s9 = scalar_lea.sflag [#allocation7], 1
    %10 = vsyncpa %s9, 0
    %11 = vsyncpa [#allocation5], 0
    %s12 = scalar_lea.sflag [#allocation5], 1
    %13 = vsyncpa %s12, 0
    loop: start=0, step=1, limit=5
    $region2: #{tpu_custom_call.1} parent=1 // loop_pre_header
      _
    $region3: #{tpu_custom_call.1} parent=1 // loop_header
      %s15 = sphi 0, %s19
      %p16 = scmp.ge.s32.totalorder %s15, 5
      %s22 = sphi 0, %s48
      %s23 = sphi 0, %s44
      %s24 = sphi 0, %s40
      %s25 = sphi 0, %s36
      %s26 = sphi 0, %s22
      %s27 = sphi 0, %s23
      %s28 = sphi 0, %s24
      %s29 = sphi 0, %s25
      %s30 = sphi 0, %s26
      %s31 = sphi 0, %s27
      %s32 = sphi 0, %s28
      %s33 = sphi 0, %s29
      %s53 = sphi 0, %s55
      %s56 = sphi 0, %s53
      %s57 = sphi 0, %s56
      %s73 = sphi 0, %s57
      %s83 = sphi 0, %s85
      %s86 = sphi 0, %s83
      %s87 = sphi 0, %s86
      %s103 = sphi 0, %s87
      %s113 = sphi 0, %s115
      %s116 = sphi 0, %s113
      %s117 = sphi 0, %s116
      %s133 = sphi 0, %s117
    $region4: #{tpu_custom_call.1} parent=1 // loop_header_branch
      %18 = sbr.rel (%p16) target = $region8
    $region5: #{tpu_custom_call.1} parent=1 // loop_body
      %s20 = ssub.s32 %s15, 1
      %s21 = ssub.s32 %s15, 2
      %s34 = sadd.s32 1, %s25
      %p35 = scmp.ge.s32.totalorder %s34, 1
      %s36 = scalar_select %p35, 0, %s34
      %s37 = sadd.s32 1, %s24
      %s38 = scalar_select %p35, %s37, %s24
      %p39 = scmp.ge.s32.totalorder %s38, 1
      %s40 = scalar_select %p39, 0, %s38
      %s41 = sadd.s32 1, %s23
      %s42 = scalar_select %p39, %s41, %s23
      %p43 = scmp.ge.s32.totalorder %s42, 1
      %s44 = scalar_select %p43, 0, %s42
      %s45 = sadd.s32 1, %s22
      %s46 = scalar_select %p43, %s45, %s22
      %p47 = scmp.ge.s32.totalorder %s46, 3
      %s48 = scalar_select %p47, 0, %s46
      %s49 = ssub.s32 %s23, %s44
      %s50 = ssub.s32 %s25, %s36
      %s51 = sor.u32 %s49, %s50
      %p52 = scmp.eq.s32.totalorder %s51, 0
      %s54 = sadd.s32 %s53, 1
      %s55 = scalar_select %p52, %s53, %s54
      %p58 = pneg %p52
      %p59 = scmp.eq.s32.totalorder %s15, 2
      %p60 = por %p58, %p59
      %p61 = scmp.ne.s32.totalorder %s53, %s56
      %p62 = scmp.eq.s32.totalorder %s15, 0
      %p63 = por %p61, %p62
      %p64 = scmp.ne.s32.totalorder %s53, %s56
      %p65 = scmp.eq.s32.totalorder %s20, 2
      %p66 = por %p64, %p65
      %p67 = scmp.ne.s32.totalorder %s56, %s57
      %p68 = scmp.eq.s32.totalorder %s20, 0
      %p69 = por %p67, %p68
      %p70 = scmp.ne.s32.totalorder %s56, %s57
      %p71 = scmp.eq.s32.totalorder %s21, 2
      %p72 = por %p70, %p71
      %p74 = scmp.ne.s32.totalorder %s57, %s73
      %p75 = scmp.eq.s32.totalorder %s21, 0
      %p76 = por %p74, %p75
      %s77 = ssub.s32 %s22, %s48
      %s78 = ssub.s32 %s24, %s40
      %s79 = sor.u32 %s77, %s78
      %s80 = ssub.s32 %s25, %s36
      %s81 = sor.u32 %s79, %s80
      %p82 = scmp.eq.s32.totalorder %s81, 0
      %s84 = sadd.s32 %s83, 1
      %s85 = scalar_select %p82, %s83, %s84
      %p88 = pneg %p82
      %p89 = scmp.eq.s32.totalorder %s15, 2
      %p90 = por %p88, %p89
      %p91 = scmp.ne.s32.totalorder %s83, %s86
      %p92 = scmp.eq.s32.totalorder %s15, 0
      %p93 = por %p91, %p92
      %p94 = scmp.ne.s32.totalorder %s83, %s86
      %p95 = scmp.eq.s32.totalorder %s20, 2
      %p96 = por %p94, %p95
      %p97 = scmp.ne.s32.totalorder %s86, %s87
      %p98 = scmp.eq.s32.totalorder %s20, 0
      %p99 = por %p97, %p98
      %p100 = scmp.ne.s32.totalorder %s86, %s87
      %p101 = scmp.eq.s32.totalorder %s21, 2
      %p102 = por %p100, %p101
      %p104 = scmp.ne.s32.totalorder %s87, %s103
      %p105 = scmp.eq.s32.totalorder %s21, 0
      %p106 = por %p104, %p105
      %s107 = ssub.s32 %s22, %s48
      %s108 = ssub.s32 %s23, %s44
      %s109 = sor.u32 %s107, %s108
      %s110 = ssub.s32 %s24, %s40
      %s111 = sor.u32 %s109, %s110
      %p112 = scmp.eq.s32.totalorder %s111, 0
      %s114 = sadd.s32 %s113, 1
      %s115 = scalar_select %p112, %s113, %s114
      %p118 = pneg %p112
      %p119 = scmp.eq.s32.totalorder %s15, 2
      %p120 = por %p118, %p119
      %p121 = scmp.ne.s32.totalorder %s113, %s116
      %p122 = scmp.eq.s32.totalorder %s15, 0
      %p123 = por %p121, %p122
      %p124 = scmp.ne.s32.totalorder %s113, %s116
      %p125 = scmp.eq.s32.totalorder %s20, 2
      %p126 = por %p124, %p125
      %p127 = scmp.ne.s32.totalorder %s116, %s117
      %p128 = scmp.eq.s32.totalorder %s20, 0
      %p129 = por %p127, %p128
      %p130 = scmp.ne.s32.totalorder %s116, %s117
      %p131 = scmp.eq.s32.totalorder %s21, 2
      %p132 = por %p130, %p131
      %p134 = scmp.ne.s32.totalorder %s117, %s133
      %p135 = scmp.eq.s32.totalorder %s21, 0
      %p136 = por %p134, %p135
      %p137 = scmp.le.s32.totalorder 1, %s15
      %p138 = scmp.lt.s32.totalorder %s15, 4
      %p139 = pnand %p137, %p138
      %p140 = pneg %p139
      // Predicated region
      $region9: #{tpu_custom_call.1} parent=5 // pred_check
        _
      $region10: #{tpu_custom_call.1} parent=5 // pred_check_branch
        %142 = sbr.rel (%p139) target = $region12
      $region11: #{tpu_custom_call.1} parent=5 // pred_region
        %s143 = ssub.s32 %s15, 1
        // Predicated region
        $region13: #{tpu_custom_call.1} parent=11 // pred_check
          %p144 = pneg %p69
        $region14: #{tpu_custom_call.1} parent=11 // pred_check_branch
          %146 = sbr.rel (%p144) target = $region16
        $region15: #{tpu_custom_call.1} parent=11 // pred_region
          %s147 = smul.u32 2, %s27
          %s149 = ssub.s32 256, 256
          %150 = vsyncadd [#allocation4], %s149
          %s151 = sadd.s32 %s29, %s147
          %s152 = smul.addr %s151, 128
          %s153 = scalar_lea.hbm %s0, %s152
          %s154 = sshll.u32 [#allocation3], 4
          %s155 = int_to_ptr.vmem [resolvable:$true] %s154
          %160 = dma.hbm_to_vmem [thread:$0]  %s153, 256, %s155, [#allocation4], 128, 128, 8
        $region16: #{tpu_custom_call.1} parent=11 // pred_fallthru
          _
      $region12: #{tpu_custom_call.1} parent=5 // pred_fallthru
        _
      %p161 = scmp.lt.s32.totalorder %s15, 3
      // Predicated region
      $region17: #{tpu_custom_call.1} parent=5 // pred_check
        %p162 = pneg %p161
      $region18: #{tpu_custom_call.1} parent=5 // pred_check_branch
        %164 = sbr.rel (%p162) target = $region20
      $region19: #{tpu_custom_call.1} parent=5 // pred_region
        // Predicated region
        $region21: #{tpu_custom_call.1} parent=19 // pred_check
          %p165 = pneg %p93
        $region22: #{tpu_custom_call.1} parent=19 // pred_check_branch
          %167 = sbr.rel (%p165) target = $region24
        $region23: #{tpu_custom_call.1} parent=19 // pred_region
          %s168 = sand.u32 %s83, 1
          %s169 = scalar_lea.sflag [#allocation7], %s168
          %s170 = sand.u32 %s83, 1
          %s171 = smul.addr %s170, 32
          %s172 = scalar_lea.vmem [#allocation6], %s171
          %s173 = smul.u32 4, %s24
          %s175 = ssub.s32 512, 512
          %176 = vsyncadd %s169, %s175
          %s177 = sadd.s32 %s25, %s173
          %s178 = smul.addr %s22, 4
          %s179 = sadd.s32 %s177, %s178
          %s180 = smul.addr %s179, 128
          %s181 = scalar_lea.hbm %s1, %s180
          %s182 = sshll.u32 %s172, 4
          %s183 = int_to_ptr.vmem [resolvable:$true] %s182
          %188 = dma.hbm_to_vmem [thread:$0]  %s181, 512, %s183, %s169, 128, 128, 8
        $region24: #{tpu_custom_call.1} parent=19 // pred_fallthru
          _
      $region20: #{tpu_custom_call.1} parent=5 // pred_fallthru
        _
      %p189 = scmp.le.s32.totalorder 1, %s15
      %p190 = scmp.lt.s32.totalorder %s15, 4
      %p191 = pnand %p189, %p190
      %p192 = pneg %p191
      // Predicated region
      $region25: #{tpu_custom_call.1} parent=5 // pred_check
        _
      $region26: #{tpu_custom_call.1} parent=5 // pred_check_branch
        %194 = sbr.rel (%p191) target = $region28
      $region27: #{tpu_custom_call.1} parent=5 // pred_region
        %s195 = ssub.s32 %s15, 1
        // Predicated region
        $region29: #{tpu_custom_call.1} parent=27 // pred_check
          %p196 = pneg %p69
        $region30: #{tpu_custom_call.1} parent=27 // pred_check_branch
          %198 = sbr.rel (%p196) target = $region32
        $region31: #{tpu_custom_call.1} parent=27 // pred_region
          %199 = dma.done [#allocation4], 256
        $region32: #{tpu_custom_call.1} parent=27 // pred_fallthru
          _
        %s200 = sand.u32 %s86, 1
        %s201 = scalar_lea.sflag [#allocation7], %s200
        %s202 = sand.u32 %s86, 1
        %s203 = smul.addr %s202, 32
        %s204 = scalar_lea.vmem [#allocation6], %s203
        // Predicated region
        $region33: #{tpu_custom_call.1} parent=27 // pred_check
          %p205 = pneg %p99
        $region34: #{tpu_custom_call.1} parent=27 // pred_check_branch
          %207 = sbr.rel (%p205) target = $region36
        $region35: #{tpu_custom_call.1} parent=27 // pred_region
          %208 = dma.done %s201, 512
        $region36: #{tpu_custom_call.1} parent=27 // pred_fallthru
          _
        %p209 = pneg %p69
        %p210 = pneg %p66
        %s211 = sand.u32 %s86, 1
        %s212 = scalar_lea.sflag [#allocation7], %s211
        %s213 = sand.u32 %s86, 1
        %s214 = smul.addr %s213, 32
        %s215 = scalar_lea.vmem [#allocation6], %s214
        %p216 = pneg %p99
        %p217 = pneg %p96
        %p218 = pneg %p129
        %p219 = pneg %p126
        %s220 = sand.u32 %s116, 1
        %s221 = scalar_lea.sflag [#allocation5], %s220
        %s222 = sand.u32 %s116, 1
        %s223 = smul.addr %s222, 16
        %s224 = scalar_lea.vmem [#allocation8], %s223
        %s225 = smul.u32 2, %s27
        %s226 = smul.u32 4, %s28
        %s227 = smul.u32 2, %s27
        %p228 = scmp.eq.s32.totalorder %s29, 0
        // Predicated region
        $region37: #{tpu_custom_call.1} parent=27 // pred_check
          %p229 = pneg %p228
        $region38: #{tpu_custom_call.1} parent=27 // pred_check_branch
          %231 = sbr.rel (%p229) target = $region40
        $region39: #{tpu_custom_call.1} parent=27 // pred_region
          %vm232 = vcmask 261120
          %233 = vst.msk [vmem:[#allocation2] sm:$0xff] %vm232, 0.0
          %234 = vst.msk [vmem:[#allocation2 + $0x8] sm:$0xff] %vm232, 0.0
        $region40: #{tpu_custom_call.1} parent=27 // pred_fallthru
          _
        %v235 = vld [vmem:[#allocation3] sm:$0xff]
        %v236 = vld [vmem:[#allocation3 + $0x8] sm:$0xff]
        %v237 = vld [vmem:[%s204] sm:$0xff]
        %v238 = vld [vmem:[%s204 + $0x8] sm:$0xff]
        %v239 = vld [vmem:[%s204 + $0x10] sm:$0xff]
        %v240 = vld [vmem:[%s204 + $0x18] sm:$0xff]
        %v241 = vld [vmem:[#allocation2] sm:$0xff]
        %v242 = vld [vmem:[#allocation2 + $0x8] sm:$0xff]
        %vm243 = vcmask 261120
        %v245 = vsel %vm243, %v235, 0
        %v248 = vsel %vm243, %v236, 0
        %v251 = vsel %vm243, %v237, 0
        %v254 = vsel %vm243, %v238, 0
        %v257 = vsel %vm243, %v239, 0
        %v260 = vsel %vm243, %v240, 0
        %262 = vmatprep.subr.mxu0 0.0
        %263 = vmatpush1.xpose.msra.mxu0 0.0
        %264 = vmatprep.subr.mxu0 0.0
        %265 = vmatpush1.xpose.msra.mxu0 0.0
        %266 = vmatprep.subr.mxu0 0.0
        %267 = vmatpush1.xpose.msra.mxu0 0.0
        %268 = vmatprep.subr.mxu0 0.0
        %269 = vmatpush1.xpose.msra.mxu0 0.0
        %270 = vmatprep.subr.mxu0 0.0
        %271 = vmatpush1.xpose.msra.mxu0 0.0
        %272 = vmatprep.subr.mxu0 0.0
        %273 = vmatpush1.xpose.msra.mxu0 0.0
        %274 = vmatprep.subr.mxu0 0.0
        %275 = vmatpush1.xpose.msra.mxu0 0.0
        %276 = vmatprep.subr.mxu0 0.0
        %277 = vmatpush1.xpose.msra.mxu0 0.0
        %278 = vmatprep.subr.mxu0 0.0
        %279 = vmatpush1.xpose.msra.mxu0 0.0
        %280 = vmatprep.subr.mxu0 0.0
        %281 = vmatpush1.xpose.msra.mxu0 0.0
        %282 = vmatprep.subr.mxu0 0.0
        %283 = vmatpush1.xpose.msra.mxu0 0.0
        %284 = vmatprep.subr.mxu0 0.0
        %285 = vmatpush1.xpose.msra.mxu0 0.0
        %286 = vmatprep.subr.mxu0 0.0
        %287 = vmatpush1.xpose.msra.mxu0 %v260
        %288 = vmatprep.subr.mxu0 0.0
        %289 = vmatpush1.xpose.msra.mxu0 %v257
        %290 = vmatprep.subr.mxu0 0.0
        %291 = vmatpush1.xpose.msra.mxu0 %v254
        %292 = vmatprep.subr.mxu0 0.0
        %293 = vmatpush1.xpose.msra.mxu0 %v251
        %294 = vmatprep.subr.mxu0 0.0
        %295 = vmatpush2.xpose.msra.mxu0 0.0
        %296 = vmatprep.subr.mxu0 0.0
        %297 = vmatpush2.xpose.msra.mxu0 0.0
        %298 = vmatprep.subr.mxu0 0.0
        %299 = vmatpush2.xpose.msra.mxu0 0.0
        %300 = vmatprep.subr.mxu0 0.0
        %301 = vmatpush2.xpose.msra.mxu0 0.0
        %302 = vmatprep.subr.mxu0 0.0
        %303 = vmatpush2.xpose.msra.mxu0 0.0
        %304 = vmatprep.subr.mxu0 0.0
        %305 = vmatpush2.xpose.msra.mxu0 0.0
        %306 = vmatprep.subr.mxu0 0.0
        %307 = vmatpush2.xpose.msra.mxu0 0.0
        %308 = vmatprep.subr.mxu0 0.0
        %309 = vmatpush2.xpose.msra.mxu0 0.0
        %310 = vmatprep.subr.mxu0 0.0
        %311 = vmatpush2.xpose.msra.mxu0 0.0
        %312 = vmatprep.subr.mxu0 0.0
        %313 = vmatpush2.xpose.msra.mxu0 0.0
        %314 = vmatprep.subr.mxu0 0.0
        %315 = vmatpush2.xpose.msra.mxu0 0.0
        %316 = vmatprep.subr.mxu0 0.0
        %317 = vmatpush2.xpose.msra.mxu0 0.0
        %318 = vmatprep.subr.mxu0 0.0
        %319 = vmatpush2.xpose.msra.mxu0 0.0
        %320 = vmatprep.subr.mxu0 0.0
        %321 = vmatpush2.xpose.msra.mxu0 0.0
        %322 = vmatprep.subr.mxu0 0.0
        %323 = vmatpush2.xpose.msra.mxu0 0.0
        %324 = vmatprep.subr.mxu0 0.0
        %325 = vmatpush2.xpose.msra.mxu0 0.0
        %326 = vmatprep.mubr.f32.mxu0 0.0
        %327 = vmatmul.mubr.f32.gmra.mxu0 %v245
        %v328 = vpop.f32.mrf.mxu0
        %v329 = vadd.f32 0.0, %v328
        %v330 = vpop.f32.mrf.mxu0
        %331 = vmatprep.mubr.f32.mxu0 0.0
        %332 = vmatmul.mubr.f32.gmra.mxu0 %v248
        %v333 = vpop.f32.mrf.mxu0
        %v334 = vadd.f32 0.0, %v333
        %v335 = vpop.f32.mrf.mxu0
        %336 = vdwg.mxu0
        %v337 = vadd.f32 %v241, %v329
        %v338 = vadd.f32 %v242, %v334
        %339 = vst.msk [vmem:[#allocation2] sm:$0xff] %vm243, %v337
        %340 = vst.msk [vmem:[#allocation2 + $0x8] sm:$0xff] %vm243, %v338
        // Predicated region
        $region41: #{tpu_custom_call.1} parent=27 // pred_check
          %p341 = pneg %p228
        $region42: #{tpu_custom_call.1} parent=27 // pred_check_branch
          %343 = sbr.rel (%p341) target = $region44
        $region43: #{tpu_custom_call.1} parent=27 // pred_region
          %v344 = vld [vmem:[#allocation2] sm:$0xff]
          %v345 = vld [vmem:[#allocation2 + $0x8] sm:$0xff]
          %346 = vst.msk [vmem:[%s224] sm:$0xff] %vm243, %v344
          %347 = vst.msk [vmem:[%s224 + $0x8] sm:$0xff] %vm243, %v345
        $region44: #{tpu_custom_call.1} parent=27 // pred_fallthru
          _
        %s348 = sand.u32 %s116, 1
        %s349 = scalar_lea.sflag [#allocation5], %s348
        %s350 = sand.u32 %s116, 1
        %s351 = smul.addr %s350, 16
        %s352 = scalar_lea.vmem [#allocation8], %s351
        // Predicated region
        $region45: #{tpu_custom_call.1} parent=27 // pred_check
          %p353 = pneg %p126
        $region46: #{tpu_custom_call.1} parent=27 // pred_check_branch
          %355 = sbr.rel (%p353) target = $region48
        $region47: #{tpu_custom_call.1} parent=27 // pred_region
          %s356 = smul.u32 2, %s27
          %s358 = ssub.s32 256, 256
          %359 = vsyncadd %s349, %s358
          %s360 = sadd.s32 %s28, %s356
          %s361 = smul.addr %s26, 2
          %s362 = sadd.s32 %s360, %s361
          %s363 = smul.addr %s362, 128
          %s364 = scalar_lea.hbm %s2, %s363
          %s365 = sshll.u32 %s352, 4
          %s366 = int_to_ptr.vmem [resolvable:$true] %s365
          %371 = dma.vmem_to_hbm [thread:$0]  %s366, 256, %s364, %s349, 128, 128, 8
        $region48: #{tpu_custom_call.1} parent=27 // pred_fallthru
          _
      $region28: #{tpu_custom_call.1} parent=5 // pred_fallthru
        _
      %p372 = scmp.le.s32.totalorder 2, %s15
      // Predicated region
      $region49: #{tpu_custom_call.1} parent=5 // pred_check
        %p373 = pneg %p372
      $region50: #{tpu_custom_call.1} parent=5 // pred_check_branch
        %375 = sbr.rel (%p373) target = $region52
      $region51: #{tpu_custom_call.1} parent=5 // pred_region
        %s376 = ssub.s32 %s15, 2
        // Predicated region
        $region53: #{tpu_custom_call.1} parent=51 // pred_check
          %p377 = pneg %p132
        $region54: #{tpu_custom_call.1} parent=51 // pred_check_branch
          %379 = sbr.rel (%p377) target = $region56
        $region55: #{tpu_custom_call.1} parent=51 // pred_region
          %s380 = sand.u32 %s117, 1
          %s381 = scalar_lea.sflag [#allocation5], %s380
          %s382 = sand.u32 %s117, 1
          %s383 = smul.addr %s382, 16
          %s384 = scalar_lea.vmem [#allocation8], %s383
          %385 = dma.done %s381, 256
        $region56: #{tpu_custom_call.1} parent=51 // pred_fallthru
          _
      $region52: #{tpu_custom_call.1} parent=5 // pred_fallthru
        _
    $region6: #{tpu_custom_call.1} parent=1 // loop_footer
      %s19 = sadd.s32 1, %s15
    $region7: #{tpu_custom_call.1} parent=1 // loop_footer_branch
      %14 = sbr.rel target = $region3
    $region8: #{tpu_custom_call.1} parent=1 // loop_exit
      _
    %386 = vsyncpa [#allocation4], 1
    %s387 = scalar_lea.sflag [#allocation4], 1
    %388 = vsyncpa %s387, 1
    %389 = vsyncpa [#allocation7], 1
    %s390 = scalar_lea.sflag [#allocation7], 1
    %391 = vsyncpa %s390, 1
    %392 = vsyncpa [#allocation5], 1
    %s393 = scalar_lea.sflag [#allocation5], 1
    %394 = vsyncpa %s393, 1

</llo_original>
